<compile_context>
chip_gen: v5e
topology: v5e:2x2
jax: 0.10.0
libtpu: 0.0.40
codegen_flags: <defaults>
</compile_context>

<pallas_src>
import functools
import math

import jax
import jax.numpy as jnp
from jax.experimental import pallas as pl
from jax.experimental.pallas import tpu as pltpu


def _round_up(x, m):
    return (x + m - 1) // m * m


def _sublane(dtype):
    # sublane packing: f32 -> 8, bf16 -> 16, int8/fp8 -> 32
    return max(8, 32 // jnp.dtype(dtype).itemsize)


def _fused_mlp_kernel(*refs, num_layers):
    """refs = (x_ref, w_0, b_0, w_1, b_1, ..., o_ref).

    x_ref: (tm, K0)  bf16     w_i: (K_i, N_i) bf16 (pre-transposed, lane-padded)
    b_i:   (1, N_i)  f32      o_ref: (tm, N_last)
    All layer matmuls run back-to-back; the intermediate activation stays in
    registers/VMEM and is never written to HBM.
    """
    x_ref = refs[0]
    o_ref = refs[-1]

    h = x_ref[...]
    for i in range(num_layers):
        w_ref = refs[1 + 2 * i]
        b_ref = refs[2 + 2 * i]
        if i > 0:
            # Activation between layers (ReLU), computed in f32.
            # TODO(synk): nonzero dropout_prob would need pltpu.prng_* masking.
            h = jnp.maximum(h, 0.0)
        lhs = h.astype(w_ref.dtype)                 # bf16 operands on the MXU
        h = jnp.dot(lhs, w_ref[...], preferred_element_type=jnp.float32)
        h = h + b_ref[...]                          # bias already f32
    o_ref[...] = h.astype(o_ref.dtype)


def prepare_params(params, *, compute_dtype=jnp.bfloat16, lane=128,
                   max_k0_pad_ratio=2.0):
    """One-time prep of PyTorch-layout params (w: [out, in], b: [out]).

    * transpose each weight to [in, out] (no per-forward transpose),
    * cast weights to `compute_dtype` (bf16 = MXU-native on v5e/v6e/v7x),
    * keep biases in f32 (added to the f32 accumulator in-kernel),
    * zero-pad every layer's output dim to a multiple of `lane`,
    * zero-pad the first contraction dim (K0) to a lane multiple only when the
      read amplification is modest (<= max_k0_pad_ratio).
    Zero padding is numerically exact: padded biases are 0, relu(0)=0, and the
    padded rows of the next weight are 0, so padded columns never contribute.
    """
    d_in0 = params[0][0].shape[1]
    k0_pad = _round_up(d_in0, lane)
    if k0_pad > max_k0_pad_ratio * d_in0:
        k0_pad = d_in0            # tiny K0: skip padding (read amplification dominates)

    prepped = []
    prev_out_pad = k0_pad
    for (w, b) in params:
        d_out, d_in = w.shape
        out_pad = _round_up(d_out, lane)
        w_t = jnp.transpose(w).astype(compute_dtype)            # [in, out]
        w_p = jnp.zeros((prev_out_pad, out_pad), compute_dtype)
        w_p = w_p.at[:d_in, :d_out].set(w_t)
        b_p = jnp.zeros((1, out_pad), jnp.float32).at[0, :d_out].set(
            b.astype(jnp.float32))
        prepped.append((w_p, b_p))
        prev_out_pad = out_pad

    meta = dict(k0_pad=k0_pad, out_dim=params[-1][0].shape[0],
                compute_dtype=compute_dtype)
    return prepped, meta


def _choose_tm(M, sub):
    """Batch tile: sublane-aligned, <=25% padding waste, grid extent >= 2 when
    sensible so the ("parallel",) axis can feed both v7x TensorCores."""
    if M < 2 * sub:
        return _round_up(M, sub)
    if M <= 512:
        # split into ~2 tiles (megacore) while keeping each tile <= 256 rows
        return min(_round_up((M + 1) // 2, sub), 256)
    # Large batches: biggest tile with <= 25% padding waste (512 reaches ~85%
    # of HBM roofline on v6e; pass tm=128..256 explicitly when tuning v5e).
    for tm in (512, 256, 128):
        m_pad = _round_up(M, tm)
        if (m_pad - M) / m_pad <= 0.25:
            return tm
    return 128


def _vmem_limit_bytes(tm, k0_pad, prepped, compute_dtype, out_dtype):
    isz = lambda dt: jnp.dtype(dt).itemsize
    # resident weights + biases (single-buffered via pl.Buffered(1))
    w_bytes = sum(w.size * isz(w.dtype) + b.size * isz(b.dtype)
                  for (w, b) in prepped)
    x_bytes = 2 * tm * k0_pad * isz(compute_dtype)      # double-buffered x tile
    n_out_pad = prepped[-1][0].shape[1]
    o_bytes = 2 * tm * n_out_pad * isz(out_dtype)       # double-buffered out tile
    max_n = max(w.shape[1] for (w, _) in prepped)
    inter_bytes = 2 * tm * max_n * 4                    # f32 intermediates (dot out + relu)
    total = int(1.25 * (w_bytes + x_bytes + o_bytes + inter_bytes)) + (2 << 20)
    # floor at the smallest default scoped limit, cap at v7x's 64 MiB physical
    return int(min(max(total, 16 << 20), 64 << 20))


def fused_mlp_pallas(x, prepped_params, meta, tm=None):
    """Run the whole Linears stack in a single pallas_call.

    x: [M, K0]; prepped_params: list of ([K_i, N_i] bf16 weight, [1, N_i] f32 bias).
    Returns [M, out_dim] in x.dtype.
    """
    M, K0 = x.shape
    k0_pad = meta["k0_pad"]
    out_dim = meta["out_dim"]
    compute_dtype = meta["compute_dtype"]
    out_dtype = x.dtype
    assert prepped_params[0][0].shape[0] == k0_pad and K0 <= k0_pad

    sub = _sublane(compute_dtype)
    if tm is None:
        tm = _choose_tm(M, sub)
    else:
        tm = _round_up(tm, sub)
    M_pad = _round_up(M, tm)

    xc = x.astype(compute_dtype)            # bf16 matmul path, f32 accumulation
    if (M_pad, k0_pad) != (M, K0):
        xc = jnp.zeros((M_pad, k0_pad), compute_dtype).at[:M, :K0].set(xc)

    num_layers = len(prepped_params)
    n_out_pad = prepped_params[-1][0].shape[1]

    flat_params = []
    in_specs = [pl.BlockSpec((tm, k0_pad), lambda m: (m, 0))]
    for (w, b) in prepped_params:
        # Grid-invariant + single-buffered: resident in VMEM at 1x footprint.
        in_specs.append(pl.BlockSpec(w.shape, lambda m: (0, 0),
                                     pipeline_mode=pl.Buffered(1)))
        in_specs.append(pl.BlockSpec(b.shape, lambda m: (0, 0),
                                     pipeline_mode=pl.Buffered(1)))
        flat_params += [w, b]

    kernel = functools.partial(_fused_mlp_kernel, num_layers=num_layers)

    out = pl.pallas_call(
        kernel,
        out_shape=jax.ShapeDtypeStruct((M_pad, n_out_pad), out_dtype),
        grid=(M_pad // tm,),
        in_specs=in_specs,
        out_specs=pl.BlockSpec((tm, n_out_pad), lambda m: (m, 0)),
        compiler_params=pltpu.CompilerParams(
            dimension_semantics=("parallel",),
            vmem_limit_bytes=_vmem_limit_bytes(tm, k0_pad, prepped_params,
                                               compute_dtype, out_dtype),
        ),
    )(xc, *flat_params)

    return out[:M, :out_dim]


def init_linears_params(key, dimensions, dtype=jnp.float32):
    """Deterministic params matching nn.Linear default init (uniform +-1/sqrt(fan_in))."""
    params = []
    for i in range(len(dimensions) - 1):
        d_in, d_out = dimensions[i], dimensions[i + 1]
        key, kw, kb = jax.random.split(key, 3)
        bound = 1.0 / math.sqrt(d_in)
        w = jax.random.uniform(kw, (d_out, d_in), dtype, -bound, bound)  # PyTorch (out,in)
        b = jax.random.uniform(kb, (d_out,), dtype, -bound, bound)
        params.append((w, b))
    return params


def linears_forward(x, prepped_params, meta):
    return fused_mlp_pallas(x, prepped_params, meta)


def linears_reference(x, params):
    for i, (w, b) in enumerate(params):
        if i > 0:
            x = jnp.maximum(x, 0.0)
        x = x @ w.T + b
    return x


if __name__ == "__main__":
    key = jax.random.PRNGKey(0)
    batch = 16
    dimensions = [32, 64, 8]  # Linears([32, 64, 8], activation='relu', dropout_prob=0.0)

    key, kx = jax.random.split(key)
    x = jax.random.normal(kx, (batch, dimensions[0]), jnp.float32)

    params = init_linears_params(key, dimensions)
    prepped, meta = prepare_params(params)   # one-time: transpose + bf16 + lane-pad

    out = linears_forward(x, prepped, meta)
    out = jax.block_until_ready(out)

    ref = linears_reference(x, params)
    assert out.shape == (batch, dimensions[-1])
    # bf16 operands / f32 accumulation: tolerance sized for bf16 mantissa.
    assert jnp.allclose(out, ref, atol=5e-2, rtol=5e-2), "mismatch vs reference"

    print("KERNEL_OK")
</pallas_src>

<mosaic_0001>
module attributes {stable_mosaic.version = 11 : i64} {
  func.func @_fused_mlp_kernel(%arg0: i32, %arg1: memref<16x32xbf16, #tpu.memory_space<vmem>>, %arg2: memref<32x128xbf16, #tpu.memory_space<vmem>>, %arg3: memref<1x128xf32, #tpu.memory_space<vmem>>, %arg4: memref<128x128xbf16, #tpu.memory_space<vmem>>, %arg5: memref<1x128xf32, #tpu.memory_space<vmem>>, %arg6: memref<16x128xf32, #tpu.memory_space<vmem>>) attributes {dimension_semantics = [#tpu.dimension_semantics<parallel>], iteration_bounds = array<i64: 1>, scalar_prefetch = 0 : i64, scratch_operands = 0 : i64, tpu.core_type = #tpu.core_type<tc>, window_params = [{transform_indices = @transform_0, window_bounds = array<i64: 16, 32>}, {pipeline_mode = #tpu.pipeline_mode<synchronous>, transform_indices = @transform_1, window_bounds = array<i64: 32, 128>}, {pipeline_mode = #tpu.pipeline_mode<synchronous>, transform_indices = @transform_2, window_bounds = array<i64: 1, 128>}, {pipeline_mode = #tpu.pipeline_mode<synchronous>, transform_indices = @transform_3, window_bounds = array<i64: 128, 128>}, {pipeline_mode = #tpu.pipeline_mode<synchronous>, transform_indices = @transform_4, window_bounds = array<i64: 1, 128>}, {transform_indices = @transform_5, window_bounds = array<i64: 16, 128>}]} {
    %c0 = arith.constant 0 : index
    %c0_0 = arith.constant 0 : index
    %0 = vector.load %arg1[%c0, %c0_0] : memref<16x32xbf16, #tpu.memory_space<vmem>>, vector<16x32xbf16>
    %c0_1 = arith.constant 0 : index
    %c0_2 = arith.constant 0 : index
    %1 = vector.load %arg2[%c0_1, %c0_2] : memref<32x128xbf16, #tpu.memory_space<vmem>>, vector<32x128xbf16>
    %cst = arith.constant dense<0.000000e+00> : vector<16x128xf32>
    %2 = tpu.matmul %0, %1, %cst {dimension_numbers = #tpu.dot_dimension_numbers<[1], [0], [0], [1], [0, 0, 1, 1], [], []>} : vector<16x32xbf16>, vector<32x128xbf16>, vector<16x128xf32> -> vector<16x128xf32>
    %c0_3 = arith.constant 0 : index
    %c0_4 = arith.constant 0 : index
    %3 = vector.load %arg3[%c0_3, %c0_4] : memref<1x128xf32, #tpu.memory_space<vmem>>, vector<1x128xf32>
    %4 = vector.broadcast %3 : vector<1x128xf32> to vector<16x128xf32>
    %5 = arith.addf %2, %4 : vector<16x128xf32>
    %cst_5 = arith.constant 0.000000e+00 : f32
    %6 = vector.broadcast %cst_5 : f32 to vector<16x128xf32>
    %7 = arith.maximumf %5, %6 : vector<16x128xf32>
    %8 = arith.truncf %7 : vector<16x128xf32> to vector<16x128xbf16>
    %c0_6 = arith.constant 0 : index
    %c0_7 = arith.constant 0 : index
    %9 = vector.load %arg4[%c0_6, %c0_7] : memref<128x128xbf16, #tpu.memory_space<vmem>>, vector<128x128xbf16>
    %cst_8 = arith.constant dense<0.000000e+00> : vector<16x128xf32>
    %10 = tpu.matmul %8, %9, %cst_8 {dimension_numbers = #tpu.dot_dimension_numbers<[1], [0], [0], [1], [0, 0, 1, 1], [], []>} : vector<16x128xbf16>, vector<128x128xbf16>, vector<16x128xf32> -> vector<16x128xf32>
    %c0_9 = arith.constant 0 : index
    %c0_10 = arith.constant 0 : index
    %11 = vector.load %arg5[%c0_9, %c0_10] : memref<1x128xf32, #tpu.memory_space<vmem>>, vector<1x128xf32>
    %12 = vector.broadcast %11 : vector<1x128xf32> to vector<16x128xf32>
    %13 = arith.addf %10, %12 : vector<16x128xf32>
    %c0_11 = arith.constant 0 : index
    %c0_12 = arith.constant 0 : index
    %14 = vector.load %arg6[%c0_11, %c0_12] : memref<16x128xf32, #tpu.memory_space<vmem>>, vector<16x128xf32>
    tpu.vector_store %arg6[%c0_11, %c0_12], %13 {strides = array<i32>} : memref<16x128xf32, #tpu.memory_space<vmem>>, vector<16x128xf32>,
    return
  }
  func.func @transform_0(%arg0: i32) -> (i32, i32) {
    %c0_i32 = arith.constant 0 : i32
    %c0_i32_0 = arith.constant 0 : i32
    return %arg0, %c0_i32 : i32, i32
  }
  func.func @transform_1(%arg0: i32) -> (i32, i32) {
    %c0_i32 = arith.constant 0 : i32
    %c0_i32_0 = arith.constant 0 : i32
    %c0_i32_1 = arith.constant 0 : i32
    return %c0_i32, %c0_i32_0 : i32, i32
  }
  func.func @transform_2(%arg0: i32) -> (i32, i32) {
    %c0_i32 = arith.constant 0 : i32
    %c0_i32_0 = arith.constant 0 : i32
    %c0_i32_1 = arith.constant 0 : i32
    return %c0_i32, %c0_i32_0 : i32, i32
  }
  func.func @transform_3(%arg0: i32) -> (i32, i32) {
    %c0_i32 = arith.constant 0 : i32
    %c0_i32_0 = arith.constant 0 : i32
    %c0_i32_1 = arith.constant 0 : i32
    return %c0_i32, %c0_i32_0 : i32, i32
  }
  func.func @transform_4(%arg0: i32) -> (i32, i32) {
    %c0_i32 = arith.constant 0 : i32
    %c0_i32_0 = arith.constant 0 : i32
    %c0_i32_1 = arith.constant 0 : i32
    return %c0_i32, %c0_i32_0 : i32, i32
  }
  func.func @transform_5(%arg0: i32) -> (i32, i32) {
    %c0_i32 = arith.constant 0 : i32
    %c0_i32_0 = arith.constant 0 : i32
    return %arg0, %c0_i32 : i32, i32
  }
}

</mosaic_0001>

<llo_original>
// kernel: tpu_custom_call.1
$region0: #{tpu_custom_call.1}
  #allocation0 [shape = 'u32[]', space=smem, size = 0x4, offset = 0x4, fixed_abs, tag = 'smem constant byte address 0x4 - core index']
  #allocation1 [shape = 'u32[72,128]{1,0:T(1,128)}', space=vmem, size = 0x9000, scoped, tag = 'internal scratch']
  %s0 = inlined_call_operand.hbm [shape: bf16[16,32], index: 0, kind: input, shape index: {}]
  %s1 = inlined_call_operand.hbm [shape: bf16[32,128], index: 1, kind: input, shape index: {}]
  %s2 = inlined_call_operand.vmem [shape: f32[1,128], index: 2, kind: input, shape index: {}]
  %s3 = inlined_call_operand.hbm [shape: bf16[128,128], index: 3, kind: input, shape index: {}]
  %s4 = inlined_call_operand.vmem [shape: f32[1,128], index: 4, kind: input, shape index: {}]
  %s5 = inlined_call_operand.hbm [shape: f32[16,128], index: 5, kind: output, shape index: {}]
  %s6 = sld [smem:[#allocation0]]
  $region42: #{tpu_custom_call.1} parent=0
    _
  %s8 = ssub.s32 1, %s6
  %s9 = scalar_select 0, %s8, %s6
  $region1: #{tpu_custom_call.1} parent=0
    #allocation2 [shape = 'u8[4096]{0}', space=vmem, size = 0x1000, scoped, tag = 'input window, operand 0, single buffered']
    #allocation3 [shape = 's32[1]{0}', space=sflag, size = 0x4, scoped, tag = 'scoped memory for tpu_custom_call.1']
    #allocation4 [shape = 's32[1]{0}', space=sflag, size = 0x4, scoped, tag = 'scoped memory for tpu_custom_call.1']
    #allocation5 [shape = 'u8[8192]{0}', space=vmem, size = 0x2000, scoped, tag = 'input window, operand 1, single buffered']
    #allocation6 [shape = 's32[1]{0}', space=sflag, size = 0x4, scoped, tag = 'scoped memory for tpu_custom_call.1']
    #allocation7 [shape = 'u8[32768]{0}', space=vmem, size = 0x8000, scoped, tag = 'input window, operand 3, single buffered']
    #allocation8 [shape = 'u8[8192]{0}', space=vmem, size = 0x2000, scoped, tag = 'output window, operand 0, single buffered']
    %10 = vsyncpa [#allocation3], 0
    %11 = vsyncpa [#allocation6], 0
    %12 = vsyncpa [#allocation4], 0
    // Predicated region
    $region2: #{tpu_custom_call.1} parent=1 // pred_check
      _
    $region3: #{tpu_custom_call.1} parent=1 // pred_check_branch
      %14 = sbr.rel (0) target = $region5
    $region4: #{tpu_custom_call.1} parent=1 // pred_region
      %16 = vsyncadd [#allocation3], 0
      %s17 = sshll.u32 %s0, 4
      %s18 = int_to_ptr.hbm [resolvable:$true] %s17
      %s19 = sshll.u32 [#allocation2], 4
      %s20 = int_to_ptr.vmem [resolvable:$true] %s19
      %25 = dma.hbm_to_vmem [thread:$0]  %s18, 128, %s20, [#allocation3], 64, 64, 4
    $region5: #{tpu_custom_call.1} parent=1 // pred_fallthru
      _
    // Predicated region
    $region6: #{tpu_custom_call.1} parent=1 // pred_check
      _
    $region7: #{tpu_custom_call.1} parent=1 // pred_check_branch
      %27 = sbr.rel (0) target = $region9
    $region8: #{tpu_custom_call.1} parent=1 // pred_region
      %29 = vsyncadd [#allocation6], 0
      %s30 = sshll.u32 %s1, 4
      %s31 = int_to_ptr.hbm [resolvable:$true] %s30
      %s32 = sshll.u32 [#allocation5], 4
      %s33 = int_to_ptr.vmem [resolvable:$true] %s32
      %38 = dma.hbm_to_vmem [thread:$0]  %s31, 256, %s33, [#allocation6], 64, 64, 4
    $region9: #{tpu_custom_call.1} parent=1 // pred_fallthru
      _
    // Predicated region
    $region10: #{tpu_custom_call.1} parent=1 // pred_check
      _
    $region11: #{tpu_custom_call.1} parent=1 // pred_check_branch
      %40 = sbr.rel (0) target = $region13
    $region12: #{tpu_custom_call.1} parent=1 // pred_region
      _
    $region13: #{tpu_custom_call.1} parent=1 // pred_fallthru
      _
    // Predicated region
    $region14: #{tpu_custom_call.1} parent=1 // pred_check
      _
    $region15: #{tpu_custom_call.1} parent=1 // pred_check_branch
      %42 = sbr.rel (0) target = $region17
    $region16: #{tpu_custom_call.1} parent=1 // pred_region
      %44 = vsyncadd [#allocation6], 0
      %s45 = sshll.u32 %s3, 4
      %s46 = int_to_ptr.hbm [resolvable:$true] %s45
      %s47 = sshll.u32 [#allocation7], 4
      %s48 = int_to_ptr.vmem [resolvable:$true] %s47
      %53 = dma.hbm_to_vmem [thread:$0]  %s46, 1024, %s48, [#allocation6], 64, 64, 4
    $region17: #{tpu_custom_call.1} parent=1 // pred_fallthru
      _
    // Predicated region
    $region18: #{tpu_custom_call.1} parent=1 // pred_check
      _
    $region19: #{tpu_custom_call.1} parent=1 // pred_check_branch
      %55 = sbr.rel (0) target = $region21
    $region20: #{tpu_custom_call.1} parent=1 // pred_region
      _
    $region21: #{tpu_custom_call.1} parent=1 // pred_fallthru
      _
    // Predicated region
    $region22: #{tpu_custom_call.1} parent=1 // pred_check
      _
    $region23: #{tpu_custom_call.1} parent=1 // pred_check_branch
      %57 = sbr.rel (0) target = $region25
    $region24: #{tpu_custom_call.1} parent=1 // pred_region
      %59 = dma.done [#allocation3], 128
    $region25: #{tpu_custom_call.1} parent=1 // pred_fallthru
      _
    // Predicated region
    $region26: #{tpu_custom_call.1} parent=1 // pred_check
      _
    $region27: #{tpu_custom_call.1} parent=1 // pred_check_branch
      %61 = sbr.rel (0) target = $region29
    $region28: #{tpu_custom_call.1} parent=1 // pred_region
      %63 = dma.done [#allocation6], 256
    $region29: #{tpu_custom_call.1} parent=1 // pred_fallthru
      _
    // Predicated region
    $region30: #{tpu_custom_call.1} parent=1 // pred_check
      _
    $region31: #{tpu_custom_call.1} parent=1 // pred_check_branch
      %65 = sbr.rel (0) target = $region33
    $region32: #{tpu_custom_call.1} parent=1 // pred_region
      %67 = dma.done [#allocation6], 1024
    $region33: #{tpu_custom_call.1} parent=1 // pred_fallthru
      _
    %v69 = vld [vmem:[#allocation2] sm:$0xf]
    %v70 = vld [vmem:[#allocation2 + $0x4] sm:$0xf]
    %v71 = vld [vmem:[#allocation5] sm:$0xf]
    %v72 = vld [vmem:[#allocation5 + $0x4] sm:$0xf]
    %v73 = vld [vmem:[#allocation5 + $0x8] sm:$0xf]
    %v74 = vld [vmem:[#allocation5 + $0xc] sm:$0xf]
    %v75 = vld [vmem:[%s2] sm:$0x1]
    %v77 = vperm.slane %v75, 0
    %v81 = vunpack.c.l.b16 %v69
    %v82 = vunpack.c.l.b16 %v70
    %v83 = vpack.c.b16 %v82, %v81
    %v88 = vunpack.c.l.b16 %v71
    %v89 = vunpack.c.l.b16 %v72
    %v90 = vunpack.c.l.b16 %v73
    %v91 = vunpack.c.l.b16 %v74
    %v92 = vpack.c.b16 %v89, %v88
    %v93 = vpack.c.b16 %v91, %v90
    %vm96 = vcmask 261120
    %v98 = vsel %vm96, %v83, 0
    %100 = vmatpush.bf16.msra.mxu0 0
    %101 = vmatpush.bf16.msra.mxu0 0
    %102 = vmatpush.bf16.msra.mxu0 0
    %103 = vmatpush.bf16.msra.mxu0 0
    %104 = vmatpush.bf16.msra.mxu0 0
    %105 = vmatpush.bf16.msra.mxu0 0
    %106 = vmatpush.bf16.msra.mxu0 %v93
    %107 = vmatpush.bf16.msra.mxu0 %v92
    %108 = vmatmul.bf16.gmra.mxu0 %v98
    %v109 = vpop.f32.mrf.mxu0
    %v110 = vadd.f32 %v77, %v109
    %v111 = vpop.f32.mrf.mxu0
    %v112 = vadd.f32 %v77, %v111
    %113 = vdwg.mxu0
    %v114 = vmax.f32 %v110, 0.0
    %v115 = vmax.f32 %v112, 0.0
    %v116 = vpack.c.bf16 %v115, %v114
    %v117 = vld [vmem:[#allocation7] sm:$0xf]
    %v118 = vld [vmem:[#allocation7 + $0x4] sm:$0xf]
    %v119 = vld [vmem:[#allocation7 + $0x8] sm:$0xf]
    %v120 = vld [vmem:[#allocation7 + $0xc] sm:$0xf]
    %v121 = vld [vmem:[#allocation7 + $0x10] sm:$0xf]
    %v122 = vld [vmem:[#allocation7 + $0x14] sm:$0xf]
    %v123 = vld [vmem:[#allocation7 + $0x18] sm:$0xf]
    %v124 = vld [vmem:[#allocation7 + $0x1c] sm:$0xf]
    %v125 = vld [vmem:[#allocation7 + $0x20] sm:$0xf]
    %v126 = vld [vmem:[#allocation7 + $0x24] sm:$0xf]
    %v127 = vld [vmem:[#allocation7 + $0x28] sm:$0xf]
    %v128 = vld [vmem:[#allocation7 + $0x2c] sm:$0xf]
    %v129 = vld [vmem:[#allocation7 + $0x30] sm:$0xf]
    %v130 = vld [vmem:[#allocation7 + $0x34] sm:$0xf]
    %v131 = vld [vmem:[#allocation7 + $0x38] sm:$0xf]
    %v132 = vld [vmem:[#allocation7 + $0x3c] sm:$0xf]
    %v133 = vld [vmem:[%s4] sm:$0x1]
    %v135 = vperm.slane %v133, 0
    %v153 = vunpack.c.l.b16 %v117
    %v154 = vunpack.c.l.b16 %v118
    %v155 = vunpack.c.l.b16 %v119
    %v156 = vunpack.c.l.b16 %v120
    %v157 = vunpack.c.l.b16 %v121
    %v158 = vunpack.c.l.b16 %v122
    %v159 = vunpack.c.l.b16 %v123
    %v160 = vunpack.c.l.b16 %v124
    %v161 = vunpack.c.l.b16 %v125
    %v162 = vunpack.c.l.b16 %v126
    %v163 = vunpack.c.l.b16 %v127
    %v164 = vunpack.c.l.b16 %v128
    %v165 = vunpack.c.l.b16 %v129
    %v166 = vunpack.c.l.b16 %v130
    %v167 = vunpack.c.l.b16 %v131
    %v168 = vunpack.c.l.b16 %v132
    %v169 = vpack.c.b16 %v154, %v153
    %v170 = vpack.c.b16 %v156, %v155
    %v171 = vpack.c.b16 %v158, %v157
    %v172 = vpack.c.b16 %v160, %v159
    %v173 = vpack.c.b16 %v162, %v161
    %v174 = vpack.c.b16 %v164, %v163
    %v175 = vpack.c.b16 %v166, %v165
    %v176 = vpack.c.b16 %v168, %v167
    %185 = vmatpush.bf16.msra.mxu0 %v176
    %186 = vmatpush.bf16.msra.mxu0 %v175
    %187 = vmatpush.bf16.msra.mxu0 %v174
    %188 = vmatpush.bf16.msra.mxu0 %v173
    %189 = vmatpush.bf16.msra.mxu0 %v172
    %190 = vmatpush.bf16.msra.mxu0 %v171
    %191 = vmatpush.bf16.msra.mxu0 %v170
    %192 = vmatpush.bf16.msra.mxu0 %v169
    %193 = vmatmul.bf16.gmra.mxu0 %v116
    %v194 = vpop.f32.mrf.mxu0
    %v195 = vadd.f32 %v135, %v194
    %v196 = vpop.f32.mrf.mxu0
    %v197 = vadd.f32 %v135, %v196
    %198 = vdwg.mxu0
    %199 = vst [vmem:[#allocation8] sm:$0xff] %v195
    %200 = vst [vmem:[#allocation8 + $0x8] sm:$0xff] %v197
    // Predicated region
    $region34: #{tpu_custom_call.1} parent=1 // pred_check
      _
    $region35: #{tpu_custom_call.1} parent=1 // pred_check_branch
      %202 = sbr.rel (0) target = $region37
    $region36: #{tpu_custom_call.1} parent=1 // pred_region
      %204 = vsyncadd [#allocation4], 0
      %s205 = sshll.u32 [#allocation8], 4
      %s206 = int_to_ptr.vmem [resolvable:$true] %s205
      %s207 = sshll.u32 %s5, 4
      %s208 = int_to_ptr.hbm [resolvable:$true] %s207
      %213 = dma.vmem_to_hbm [thread:$0]  %s206, 256, %s208, [#allocation4], 128, 128, 8
    $region37: #{tpu_custom_call.1} parent=1 // pred_fallthru
      _
    // Predicated region
    $region38: #{tpu_custom_call.1} parent=1 // pred_check
      _
    $region39: #{tpu_custom_call.1} parent=1 // pred_check_branch
      %215 = sbr.rel (0) target = $region41
    $region40: #{tpu_custom_call.1} parent=1 // pred_region
      %217 = dma.done [#allocation4], 256
    $region41: #{tpu_custom_call.1} parent=1 // pred_fallthru
      _
    %218 = vsyncpa [#allocation3], 1
    %219 = vsyncpa [#allocation6], 1
    %220 = vsyncpa [#allocation4], 1

</llo_original>
